<compile_context>
chip_gen: v7x
topology: tpu7x:2x2x1
jax: 0.10.0
libtpu: 0.0.40
codegen_flags: <defaults>
</compile_context>

<pallas_src>
import functools

import jax
import jax.numpy as jnp
from jax import lax
from jax.experimental import pallas as pl
from jax.experimental.pallas import tpu as pltpu


def _round_up(x, m):
    return ((x + m - 1) // m) * m


def pgnet_loss_kernel(obs_ref, w1_ref, b1_ref, w2_ref, b2_ref, acs_ref, res_ref,
                      out_ref, acc_ref, *, inv_batch):
    g = pl.program_id(1)

    @pl.when(g == 0)
    def _():
        acc_ref[...] = jnp.zeros_like(acc_ref)

    # fc1 + tanh, transposed (batch on lanes). obs tile is bf16 in VMEM; promote
    # to f32 so the matmul + all elementwise math accumulate/run in f32.
    obs = obs_ref[...].astype(jnp.float32)                                   # [F, TB]
    h = jnp.tanh(
        jnp.dot(w1_ref[...], obs, preferred_element_type=jnp.float32)
        + b1_ref[...]                                                        # [H, 1] bcast
    )                                                                        # [H, TB]
    logits = (
        jnp.dot(w2_ref[...], h, preferred_element_type=jnp.float32)
        + b2_ref[...]                                                        # [A, 1] bcast
    )                                                                        # [A, TB]

    # Per-sample cross entropy over the action (sublane) axis.
    m = jnp.max(logits, axis=0, keepdims=True)                               # [1, TB]
    lse = m + jnp.log(jnp.sum(jnp.exp(logits - m), axis=0, keepdims=True))   # [1, TB]
    row_ids = lax.broadcasted_iota(jnp.int32, logits.shape, 0)               # [A, TB]
    onehot = (row_ids == acs_ref[...]).astype(jnp.float32)                   # [A, TB]
    picked = jnp.sum(logits * onehot, axis=0, keepdims=True)                 # [1, TB]
    nll = lse - picked                                                       # [1, TB]

    # Lane-dense running accumulator; padded rows have res == 0 so they add 0.
    acc_ref[...] += nll * res_ref[...]

    @pl.when(g == pl.num_programs(1) - 1)
    def _():
        # Divide by the GLOBAL batch size (not the tile / padded size).
        shard_loss = jnp.sum(acc_ref[...]) * inv_batch
        out_ref[...] = jnp.full(out_ref.shape, shard_loss, dtype=out_ref.dtype)


def pgnet_loss(acs, obs, res, w1, b1, w2, b2, *, tile_b=2048, num_shards=2):
    """acs: int [B], obs: f32 [B, num_fea], res: f32 [B].
       w1: [hidden, num_fea], b1: [hidden], w2: [num_act, hidden], b2: [num_act]
       (PyTorch nn.Linear layout). Returns scalar loss."""
    B, F = obs.shape
    H = w1.shape[0]
    A = w2.shape[0]

    # Batch tile: multiple of 128, at most tile_b. Pad B so it splits evenly
    # across num_shards parallel shards of G tiles each.
    TB = min(tile_b, _round_up(max(B, 1), 128))
    B_pad = _round_up(B, TB * num_shards)
    G = B_pad // (TB * num_shards)

    # Transposed, lane-dense, bf16 obs; padded rows are zero and masked out via res=0.
    obs_t = jnp.zeros((F, B_pad), jnp.bfloat16).at[:, :B].set(
        obs.T.astype(jnp.bfloat16))
    acs2d = jnp.zeros((1, B_pad), jnp.int32).at[0, :B].set(acs.astype(jnp.int32))
    res2d = jnp.zeros((1, B_pad), jnp.float32).at[0, :B].set(res.astype(jnp.float32))
    b1c = b1.reshape(H, 1).astype(jnp.float32)
    b2c = b2.reshape(A, 1).astype(jnp.float32)

    kernel = functools.partial(pgnet_loss_kernel, inv_batch=1.0 / B)

    # NOTE: if the obs DMA is still exposed at small TB, add
    # pipeline_mode=pl.Buffered(3) on the obs BlockSpec.
    out = pl.pallas_call(
        kernel,
        out_shape=jax.ShapeDtypeStruct((num_shards * 8, 128), jnp.float32),
        grid_spec=pltpu.PrefetchScalarGridSpec(
            num_scalar_prefetch=0,
            grid=(num_shards, G),
            in_specs=[
                pl.BlockSpec((F, TB), lambda p, g: (0, p * G + g)),   # obs_T tile
                pl.BlockSpec((H, F), lambda p, g: (0, 0)),            # w1 (resident)
                pl.BlockSpec((H, 1), lambda p, g: (0, 0)),            # b1
                pl.BlockSpec((A, H), lambda p, g: (0, 0)),            # w2
                pl.BlockSpec((A, 1), lambda p, g: (0, 0)),            # b2
                pl.BlockSpec((1, TB), lambda p, g: (0, p * G + g)),   # acs row
                pl.BlockSpec((1, TB), lambda p, g: (0, p * G + g)),   # res row
            ],
            out_specs=pl.BlockSpec((8, 128), lambda p, g: (p, 0)),
            scratch_shapes=[pltpu.VMEM((1, TB), jnp.float32)],
        ),
        compiler_params=pltpu.CompilerParams(
            dimension_semantics=("parallel", "arbitrary")),
    )(obs_t, w1.astype(jnp.float32), b1c, w2.astype(jnp.float32), b2c,
      acs2d, res2d)

    # Each shard's partial (already / B) lives at out[p*8, 0]; combine shards.
    return jnp.sum(out[::8, 0])


def init_params(key, num_fea, num_act, hidden=10):
    """PyTorch-layout params matching PGNet.__init__:
       weights ~ N(0, 0.3); biases U(-1/sqrt(fan_in), 1/sqrt(fan_in))."""
    k1, k2, k3, k4 = jax.random.split(key, 4)
    w1 = 0.3 * jax.random.normal(k1, (hidden, num_fea), dtype=jnp.float32)
    w2 = 0.3 * jax.random.normal(k2, (num_act, hidden), dtype=jnp.float32)
    b1 = jax.random.uniform(k3, (hidden,), jnp.float32,
                            -1.0 / jnp.sqrt(num_fea), 1.0 / jnp.sqrt(num_fea))
    b2 = jax.random.uniform(k4, (num_act,), jnp.float32,
                            -1.0 / jnp.sqrt(hidden), 1.0 / jnp.sqrt(hidden))
    return w1, b1, w2, b2


if __name__ == "__main__":
    num_fea, num_act, hidden, batch = 16, 8, 10, 8

    key = jax.random.PRNGKey(0)
    kp, ko, ka, kr = jax.random.split(key, 4)

    w1, b1, w2, b2 = init_params(kp, num_fea, num_act, hidden)
    obs = jax.random.normal(ko, (batch, num_fea), dtype=jnp.float32)
    acs = jax.random.randint(ka, (batch,), 0, num_act, dtype=jnp.int32)
    res = jax.random.normal(kr, (batch,), dtype=jnp.float32)

    loss = pgnet_loss(acs, obs, res, w1, b1, w2, b2)
    jax.block_until_ready(loss)

    # Pure-JAX reference (same math as torch CrossEntropyLoss(reduce=False)).
    # obs is rounded to bf16 to match the kernel's DMA dtype; all other math f32.
    obs_q = obs.astype(jnp.bfloat16).astype(jnp.float32)
    h = jnp.tanh(obs_q @ w1.T + b1)
    logits = h @ w2.T + b2
    lse = jax.scipy.special.logsumexp(logits, axis=-1)
    nll = lse - jnp.take_along_axis(logits, acs[:, None], axis=-1)[:, 0]
    ref = jnp.mean(nll * res)

    assert jnp.allclose(loss, ref, atol=1e-4, rtol=1e-4), (loss, ref)
    print("KERNEL_OK")
</pallas_src>

<mosaic_0001>
module attributes {stable_mosaic.version = 11 : i64} {
  func.func @pgnet_loss_kernel(%arg0: i32, %arg1: i32, %arg2: memref<16x128xbf16, #tpu.memory_space<vmem>>, %arg3: memref<10x16xf32, #tpu.memory_space<vmem>>, %arg4: memref<10x1xf32, #tpu.memory_space<vmem>>, %arg5: memref<8x10xf32, #tpu.memory_space<vmem>>, %arg6: memref<8x1xf32, #tpu.memory_space<vmem>>, %arg7: memref<1x128xi32, #tpu.memory_space<vmem>>, %arg8: memref<1x128xf32, #tpu.memory_space<vmem>>, %arg9: memref<8x128xf32, #tpu.memory_space<vmem>>, %arg10: memref<1x128xf32, #tpu.memory_space<vmem>>) attributes {dimension_semantics = [#tpu.dimension_semantics<parallel>, #tpu.dimension_semantics<arbitrary>], iteration_bounds = array<i64: 2, 1>, scalar_prefetch = 0 : i64, scratch_operands = 1 : i64, tpu.core_type = #tpu.core_type<tc>, window_params = [{transform_indices = @transform_0, window_bounds = array<i64: 16, 128>}, {pipeline_mode = #tpu.pipeline_mode<synchronous>, transform_indices = @transform_1, window_bounds = array<i64: 10, 16>}, {pipeline_mode = #tpu.pipeline_mode<synchronous>, transform_indices = @transform_2, window_bounds = array<i64: 10, 1>}, {pipeline_mode = #tpu.pipeline_mode<synchronous>, transform_indices = @transform_3, window_bounds = array<i64: 8, 10>}, {pipeline_mode = #tpu.pipeline_mode<synchronous>, transform_indices = @transform_4, window_bounds = array<i64: 8, 1>}, {transform_indices = @transform_5, window_bounds = array<i64: 1, 128>}, {transform_indices = @transform_6, window_bounds = array<i64: 1, 128>}, {transform_indices = @transform_7, window_bounds = array<i64: 8, 128>}]} {
    %c0_i32 = arith.constant 0 : i32
    %0 = arith.cmpi eq, %arg1, %c0_i32 : i32
    %1 = arith.extui %0 : i1 to i32
    %c0_i32_0 = arith.constant 0 : i32
    %2 = arith.cmpi ne, %1, %c0_i32_0 : i32
    scf.if %2 {
      %cst_24 = arith.constant 0.000000e+00 : f32
      %43 = vector.broadcast %cst_24 : f32 to vector<1x128xf32>
      %c0_25 = arith.constant 0 : index
      %c0_26 = arith.constant 0 : index
      %44 = vector.load %arg10[%c0_25, %c0_26] : memref<1x128xf32, #tpu.memory_space<vmem>>, vector<1x128xf32>
      tpu.vector_store %arg10[%c0_25, %c0_26], %43 {strides = array<i32>} : memref<1x128xf32, #tpu.memory_space<vmem>>, vector<1x128xf32>,
    } else {
    }
    %c0 = arith.constant 0 : index
    %c0_1 = arith.constant 0 : index
    %3 = vector.load %arg2[%c0, %c0_1] : memref<16x128xbf16, #tpu.memory_space<vmem>>, vector<16x128xbf16>
    %4 = arith.extf %3 : vector<16x128xbf16> to vector<16x128xf32>
    %c0_2 = arith.constant 0 : index
    %c0_3 = arith.constant 0 : index
    %5 = vector.load %arg3[%c0_2, %c0_3] : memref<10x16xf32, #tpu.memory_space<vmem>>, vector<10x16xf32>
    %cst = arith.constant dense<0.000000e+00> : vector<10x128xf32>
    %6 = tpu.matmul %5, %4, %cst {dimension_numbers = #tpu.dot_dimension_numbers<[1], [0], [0], [1], [0, 0, 1, 1], [], []>} : vector<10x16xf32>, vector<16x128xf32>, vector<10x128xf32> -> vector<10x128xf32>
    %c0_4 = arith.constant 0 : index
    %c0_5 = arith.constant 0 : index
    %7 = vector.load %arg4[%c0_4, %c0_5] : memref<10x1xf32, #tpu.memory_space<vmem>>, vector<10x1xf32>
    %8 = vector.broadcast %7 : vector<10x1xf32> to vector<10x128xf32>
    %9 = arith.addf %6, %8 : vector<10x128xf32>
    %10 = math.tanh %9 : vector<10x128xf32>
    %c0_6 = arith.constant 0 : index
    %c0_7 = arith.constant 0 : index
    %11 = vector.load %arg5[%c0_6, %c0_7] : memref<8x10xf32, #tpu.memory_space<vmem>>, vector<8x10xf32>
    %cst_8 = arith.constant dense<0.000000e+00> : vector<8x128xf32>
    %12 = tpu.matmul %11, %10, %cst_8 {dimension_numbers = #tpu.dot_dimension_numbers<[1], [0], [0], [1], [0, 0, 1, 1], [], []>} : vector<8x10xf32>, vector<10x128xf32>, vector<8x128xf32> -> vector<8x128xf32>
    %c0_9 = arith.constant 0 : index
    %c0_10 = arith.constant 0 : index
    %13 = vector.load %arg6[%c0_9, %c0_10] : memref<8x1xf32, #tpu.memory_space<vmem>>, vector<8x1xf32>
    %14 = vector.broadcast %13 : vector<8x1xf32> to vector<8x128xf32>
    %15 = arith.addf %12, %14 : vector<8x128xf32>
    %cst_11 = arith.constant dense<0xFF800000> : vector<128xf32>
    %16 = vector.multi_reduction <maximumf>, %15, %cst_11 [0] : vector<8x128xf32> to vector<128xf32>
    %17 = vector.shape_cast %16 : vector<128xf32> to vector<1x128xf32>
    %18 = vector.broadcast %17 : vector<1x128xf32> to vector<8x128xf32>
    %19 = arith.subf %15, %18 : vector<8x128xf32>
    %20 = math.exp %19 : vector<8x128xf32>
    %cst_12 = arith.constant dense<0.000000e+00> : vector<128xf32>
    %21 = vector.multi_reduction <add>, %20, %cst_12 [0] : vector<8x128xf32> to vector<128xf32>
    %22 = vector.shape_cast %21 : vector<128xf32> to vector<1x128xf32>
    %23 = math.log %22 : vector<1x128xf32>
    %24 = arith.addf %17, %23 : vector<1x128xf32>
    %25 = tpu.iota {dimensions = array<i32: 0>} : vector<8x128xi32>
    %c0_13 = arith.constant 0 : index
    %c0_14 = arith.constant 0 : index
    %26 = vector.load %arg7[%c0_13, %c0_14] : memref<1x128xi32, #tpu.memory_space<vmem>>, vector<1x128xi32>
    %27 = vector.broadcast %26 : vector<1x128xi32> to vector<8x128xi32>
    %28 = arith.cmpi eq, %25, %27 : vector<8x128xi32>
    %29 = arith.extui %28 : vector<8x128xi1> to vector<8x128xi32>
    %30 = arith.sitofp %29 : vector<8x128xi32> to vector<8x128xf32>
    %31 = arith.mulf %15, %30 : vector<8x128xf32>
    %cst_15 = arith.constant dense<0.000000e+00> : vector<128xf32>
    %32 = vector.multi_reduction <add>, %31, %cst_15 [0] : vector<8x128xf32> to vector<128xf32>
    %33 = vector.shape_cast %32 : vector<128xf32> to vector<1x128xf32>
    %34 = arith.subf %24, %33 : vector<1x128xf32>
    %c0_16 = arith.constant 0 : index
    %c0_17 = arith.constant 0 : index
    %35 = vector.load %arg10[%c0_16, %c0_17] : memref<1x128xf32, #tpu.memory_space<vmem>>, vector<1x128xf32>
    %c0_18 = arith.constant 0 : index
    %c0_19 = arith.constant 0 : index
    %36 = vector.load %arg8[%c0_18, %c0_19] : memref<1x128xf32, #tpu.memory_space<vmem>>, vector<1x128xf32>
    %37 = arith.mulf %34, %36 : vector<1x128xf32>
    %38 = arith.addf %35, %37 : vector<1x128xf32>
    %c0_20 = arith.constant 0 : index
    %c0_21 = arith.constant 0 : index
    %39 = vector.load %arg10[%c0_20, %c0_21] : memref<1x128xf32, #tpu.memory_space<vmem>>, vector<1x128xf32>
    tpu.vector_store %arg10[%c0_20, %c0_21], %38 {strides = array<i32>} : memref<1x128xf32, #tpu.memory_space<vmem>>, vector<1x128xf32>,
    %c0_i32_22 = arith.constant 0 : i32
    %40 = arith.cmpi eq, %arg1, %c0_i32_22 : i32
    %41 = arith.extui %40 : i1 to i32
    %c0_i32_23 = arith.constant 0 : i32
    %42 = arith.cmpi ne, %41, %c0_i32_23 : i32
    scf.if %42 {
      %c0_24 = arith.constant 0 : index
      %c0_25 = arith.constant 0 : index
      %43 = vector.load %arg10[%c0_24, %c0_25] : memref<1x128xf32, #tpu.memory_space<vmem>>, vector<1x128xf32>
      %44 = vector.shape_cast %43 : vector<1x128xf32> to vector<1x1x128xf32>
      %cst_26 = arith.constant dense<0.000000e+00> : vector<1xf32>
      %45 = vector.multi_reduction <add>, %44, %cst_26 [1, 2] : vector<1x1x128xf32> to vector<1xf32>
      %46 = vector.shape_cast %45 : vector<1xf32> to vector<1x1x1xf32>
      %47 = vector.extract %46[0, 0, 0] : f32 from vector<1x1x1xf32>
      %cst_27 = arith.constant 1.250000e-01 : f32
      %48 = arith.mulf %47, %cst_27 : f32
      %49 = vector.broadcast %48 : f32 to vector<8x128xf32>
      %c0_28 = arith.constant 0 : index
      %c0_29 = arith.constant 0 : index
      %50 = vector.load %arg9[%c0_28, %c0_29] : memref<8x128xf32, #tpu.memory_space<vmem>>, vector<8x128xf32>
      tpu.vector_store %arg9[%c0_28, %c0_29], %49 {strides = array<i32>} : memref<8x128xf32, #tpu.memory_space<vmem>>, vector<8x128xf32>,
    } else {
    }
    return
  }
  func.func @transform_0(%arg0: i32, %arg1: i32) -> (i32, i32) {
    %c1_i32 = arith.constant 1 : i32
    %0 = arith.muli %arg0, %c1_i32 : i32
    %1 = arith.addi %0, %arg1 : i32
    %c0_i32 = arith.constant 0 : i32
    %c0_i32_0 = arith.constant 0 : i32
    return %c0_i32, %1 : i32, i32
  }
  func.func @transform_1(%arg0: i32, %arg1: i32) -> (i32, i32) {
    %c0_i32 = arith.constant 0 : i32
    %c0_i32_0 = arith.constant 0 : i32
    %c0_i32_1 = arith.constant 0 : i32
    return %c0_i32, %c0_i32_0 : i32, i32
  }
  func.func @transform_2(%arg0: i32, %arg1: i32) -> (i32, i32) {
    %c0_i32 = arith.constant 0 : i32
    %c0_i32_0 = arith.constant 0 : i32
    %c0_i32_1 = arith.constant 0 : i32
    return %c0_i32, %c0_i32_0 : i32, i32
  }
  func.func @transform_3(%arg0: i32, %arg1: i32) -> (i32, i32) {
    %c0_i32 = arith.constant 0 : i32
    %c0_i32_0 = arith.constant 0 : i32
    %c0_i32_1 = arith.constant 0 : i32
    return %c0_i32, %c0_i32_0 : i32, i32
  }
  func.func @transform_4(%arg0: i32, %arg1: i32) -> (i32, i32) {
    %c0_i32 = arith.constant 0 : i32
    %c0_i32_0 = arith.constant 0 : i32
    %c0_i32_1 = arith.constant 0 : i32
    return %c0_i32, %c0_i32_0 : i32, i32
  }
  func.func @transform_5(%arg0: i32, %arg1: i32) -> (i32, i32) {
    %c1_i32 = arith.constant 1 : i32
    %0 = arith.muli %arg0, %c1_i32 : i32
    %1 = arith.addi %0, %arg1 : i32
    %c0_i32 = arith.constant 0 : i32
    %c0_i32_0 = arith.constant 0 : i32
    return %c0_i32, %1 : i32, i32
  }
  func.func @transform_6(%arg0: i32, %arg1: i32) -> (i32, i32) {
    %c1_i32 = arith.constant 1 : i32
    %0 = arith.muli %arg0, %c1_i32 : i32
    %1 = arith.addi %0, %arg1 : i32
    %c0_i32 = arith.constant 0 : i32
    %c0_i32_0 = arith.constant 0 : i32
    return %c0_i32, %1 : i32, i32
  }
  func.func @transform_7(%arg0: i32, %arg1: i32) -> (i32, i32) {
    %c0_i32 = arith.constant 0 : i32
    %c0_i32_0 = arith.constant 0 : i32
    return %arg0, %c0_i32 : i32, i32
  }
}

</mosaic_0001>

<llo_original>
// kernel: tpu_custom_call.1
$region0: #{tpu_custom_call.1}
  #allocation0 [shape = 'u32[]', space=smem, size = 0x4, offset = 0x4, fixed_abs, tag = 'smem constant byte address 0x4 - core index']
  #allocation1 [shape = 'u32[144,128]{1,0:T(1,128)}', space=vmem, size = 0x12000, scoped, tag = 'internal scratch']
  #allocation2 [shape = 'f32[1,128]{1,0:T(1,128)}', space=vmem, size = 0x200, scoped, tag = 'scratch operand']
  %s0 = inlined_call_operand.vmem [shape: bf16[16,256], index: 0, kind: input, shape index: {}]
  %s1 = inlined_call_operand.hbm [shape: f32[10,16], index: 1, kind: input, shape index: {}]
  %s2 = inlined_call_operand.vmem [shape: f32[10,1], index: 2, kind: input, shape index: {}]
  %s3 = inlined_call_operand.vmem [shape: f32[8,10], index: 3, kind: input, shape index: {}]
  %s4 = inlined_call_operand.vmem [shape: f32[8,1], index: 4, kind: input, shape index: {}]
  %s5 = inlined_call_operand.vmem [shape: s32[1,256], index: 5, kind: input, shape index: {}]
  %s6 = inlined_call_operand.vmem [shape: f32[1,256], index: 6, kind: input, shape index: {}]
  %s7 = inlined_call_operand.hbm [shape: f32[16,128], index: 7, kind: output, shape index: {}]
  %s8 = sld [smem:[#allocation0]]
  $region114: #{tpu_custom_call.1} parent=0
    _
  %s10 = ssub.s32 1, %s8
  %s11 = scalar_select 0, %s10, %s8
  $region1: #{tpu_custom_call.1} parent=0
    #allocation3 [shape = 'u8[8192]{0}', space=vmem, size = 0x2000, scoped, tag = 'input window, operand 0']
    #allocation4 [shape = 'u8[8192]{0}', space=vmem, size = 0x2000, scoped, tag = 'input window, operand 1, single buffered']
    #allocation5 [shape = 's32[2]{0}', space=sflag, size = 0x8, scoped, tag = 'scoped memory for tpu_custom_call.1']
    #allocation6 [shape = 's32[2]{0}', space=sflag, size = 0x8, scoped, tag = 'scoped memory for tpu_custom_call.1']
    #allocation7 [shape = 'u8[8192]{0}', space=vmem, size = 0x2000, scoped, tag = 'output window, operand 0']
    %12 = vsyncpa [#allocation5], 0
    %13 = vsyncpa [#allocation6], 0
    %s14 = scalar_lea.sflag [#allocation6], 1
    %15 = vsyncpa %s14, 0
    loop: start=0, step=1, limit=4
    $region2: #{tpu_custom_call.1} parent=1 // loop_pre_header
      _
    $region3: #{tpu_custom_call.1} parent=1 // loop_header
      %s17 = sphi 0, %s21
      %p18 = scmp.ge.s32.totalorder %s17, 4
      %s24 = sphi 0, %s36
      %s25 = sphi 0, %s32
      %s26 = sphi 0, %s24
      %s27 = sphi 0, %s25
      %s28 = sphi 0, %s26
      %s29 = sphi 0, %s27
      %s41 = sphi 0, %s43
      %s44 = sphi 0, %s41
      %s45 = sphi 0, %s44
      %s61 = sphi 0, %s45
      %s65 = sphi 0, %s65
      %s67 = sphi 0, %s65
      %s68 = sphi 0, %s67
      %s82 = sphi 0, %s68
      %s86 = sphi 0, %s86
      %s88 = sphi 0, %s86
      %s89 = sphi 0, %s88
      %s103 = sphi 0, %s89
      %s107 = sphi 0, %s107
      %s109 = sphi 0, %s107
      %s110 = sphi 0, %s109
      %s124 = sphi 0, %s110
      %s128 = sphi 0, %s128
      %s130 = sphi 0, %s128
      %s131 = sphi 0, %s130
      %s145 = sphi 0, %s131
      %s153 = sphi 0, %s155
      %s156 = sphi 0, %s153
      %s157 = sphi 0, %s156
      %s173 = sphi 0, %s157
      %s181 = sphi 0, %s183
      %s184 = sphi 0, %s181
      %s185 = sphi 0, %s184
      %s201 = sphi 0, %s185
      %s207 = sphi 0, %s209
      %s210 = sphi 0, %s207
      %s211 = sphi 0, %s210
      %s227 = sphi 0, %s211
    $region4: #{tpu_custom_call.1} parent=1 // loop_header_branch
      %20 = sbr.rel (%p18) target = $region8
    $region5: #{tpu_custom_call.1} parent=1 // loop_body
      %s22 = ssub.s32 %s17, 1
      %s23 = ssub.s32 %s17, 2
      %s30 = sadd.s32 1, %s25
      %p31 = scmp.ge.s32.totalorder %s30, 1
      %s32 = scalar_select %p31, 0, %s30
      %s33 = sadd.s32 1, %s24
      %s34 = scalar_select %p31, %s33, %s24
      %p35 = scmp.ge.s32.totalorder %s34, 2
      %s36 = scalar_select %p35, 0, %s34
      %s37 = sadd.s32 %s24, %s25
      %s38 = sadd.s32 %s36, %s32
      %s39 = ssub.s32 %s37, %s38
      %p40 = scmp.eq.s32.totalorder %s39, 0
      %s42 = sadd.s32 %s41, 1
      %s43 = scalar_select %p40, %s41, %s42
      %p46 = pneg %p40
      %p47 = scmp.eq.s32.totalorder %s17, 1
      %p48 = por %p46, %p47
      %p49 = scmp.ne.s32.totalorder %s41, %s44
      %p50 = scmp.eq.s32.totalorder %s17, 0
      %p51 = por %p49, %p50
      %p52 = scmp.ne.s32.totalorder %s41, %s44
      %p53 = scmp.eq.s32.totalorder %s22, 1
      %p54 = por %p52, %p53
      %p55 = scmp.ne.s32.totalorder %s44, %s45
      %p56 = scmp.eq.s32.totalorder %s22, 0
      %p57 = por %p55, %p56
      %p58 = scmp.ne.s32.totalorder %s44, %s45
      %p59 = scmp.eq.s32.totalorder %s23, 1
      %p60 = por %p58, %p59
      %p62 = scmp.ne.s32.totalorder %s45, %s61
      %p63 = scmp.eq.s32.totalorder %s23, 0
      %p64 = por %p62, %p63
      %s66 = sadd.s32 %s65, 1
      %p69 = scmp.eq.s32.totalorder %s17, 1
      %p70 = scmp.ne.s32.totalorder %s65, %s67
      %p71 = scmp.eq.s32.totalorder %s17, 0
      %p72 = por %p70, %p71
      %p73 = scmp.ne.s32.totalorder %s65, %s67
      %p74 = scmp.eq.s32.totalorder %s22, 1
      %p75 = por %p73, %p74
      %p76 = scmp.ne.s32.totalorder %s67, %s68
      %p77 = scmp.eq.s32.totalorder %s22, 0
      %p78 = por %p76, %p77
      %p79 = scmp.ne.s32.totalorder %s67, %s68
      %p80 = scmp.eq.s32.totalorder %s23, 1
      %p81 = por %p79, %p80
      %p83 = scmp.ne.s32.totalorder %s68, %s82
      %p84 = scmp.eq.s32.totalorder %s23, 0
      %p85 = por %p83, %p84
      %s87 = sadd.s32 %s86, 1
      %p90 = scmp.eq.s32.totalorder %s17, 1
      %p91 = scmp.ne.s32.totalorder %s86, %s88
      %p92 = scmp.eq.s32.totalorder %s17, 0
      %p93 = por %p91, %p92
      %p94 = scmp.ne.s32.totalorder %s86, %s88
      %p95 = scmp.eq.s32.totalorder %s22, 1
      %p96 = por %p94, %p95
      %p97 = scmp.ne.s32.totalorder %s88, %s89
      %p98 = scmp.eq.s32.totalorder %s22, 0
      %p99 = por %p97, %p98
      %p100 = scmp.ne.s32.totalorder %s88, %s89
      %p101 = scmp.eq.s32.totalorder %s23, 1
      %p102 = por %p100, %p101
      %p104 = scmp.ne.s32.totalorder %s89, %s103
      %p105 = scmp.eq.s32.totalorder %s23, 0
      %p106 = por %p104, %p105
      %s108 = sadd.s32 %s107, 1
      %p111 = scmp.eq.s32.totalorder %s17, 1
      %p112 = scmp.ne.s32.totalorder %s107, %s109
      %p113 = scmp.eq.s32.totalorder %s17, 0
      %p114 = por %p112, %p113
      %p115 = scmp.ne.s32.totalorder %s107, %s109
      %p116 = scmp.eq.s32.totalorder %s22, 1
      %p117 = por %p115, %p116
      %p118 = scmp.ne.s32.totalorder %s109, %s110
      %p119 = scmp.eq.s32.totalorder %s22, 0
      %p120 = por %p118, %p119
      %p121 = scmp.ne.s32.totalorder %s109, %s110
      %p122 = scmp.eq.s32.totalorder %s23, 1
      %p123 = por %p121, %p122
      %p125 = scmp.ne.s32.totalorder %s110, %s124
      %p126 = scmp.eq.s32.totalorder %s23, 0
      %p127 = por %p125, %p126
      %s129 = sadd.s32 %s128, 1
      %p132 = scmp.eq.s32.totalorder %s17, 1
      %p133 = scmp.ne.s32.totalorder %s128, %s130
      %p134 = scmp.eq.s32.totalorder %s17, 0
      %p135 = por %p133, %p134
      %p136 = scmp.ne.s32.totalorder %s128, %s130
      %p137 = scmp.eq.s32.totalorder %s22, 1
      %p138 = por %p136, %p137
      %p139 = scmp.ne.s32.totalorder %s130, %s131
      %p140 = scmp.eq.s32.totalorder %s22, 0
      %p141 = por %p139, %p140
      %p142 = scmp.ne.s32.totalorder %s130, %s131
      %p143 = scmp.eq.s32.totalorder %s23, 1
      %p144 = por %p142, %p143
      %p146 = scmp.ne.s32.totalorder %s131, %s145
      %p147 = scmp.eq.s32.totalorder %s23, 0
      %p148 = por %p146, %p147
      %s149 = sadd.s32 %s24, %s25
      %s150 = sadd.s32 %s36, %s32
      %s151 = ssub.s32 %s149, %s150
      %p152 = scmp.eq.s32.totalorder %s151, 0
      %s154 = sadd.s32 %s153, 1
      %s155 = scalar_select %p152, %s153, %s154
      %p158 = pneg %p152
      %p159 = scmp.eq.s32.totalorder %s17, 1
      %p160 = por %p158, %p159
      %p161 = scmp.ne.s32.totalorder %s153, %s156
      %p162 = scmp.eq.s32.totalorder %s17, 0
      %p163 = por %p161, %p162
      %p164 = scmp.ne.s32.totalorder %s153, %s156
      %p165 = scmp.eq.s32.totalorder %s22, 1
      %p166 = por %p164, %p165
      %p167 = scmp.ne.s32.totalorder %s156, %s157
      %p168 = scmp.eq.s32.totalorder %s22, 0
      %p169 = por %p167, %p168
      %p170 = scmp.ne.s32.totalorder %s156, %s157
      %p171 = scmp.eq.s32.totalorder %s23, 1
      %p172 = por %p170, %p171
      %p174 = scmp.ne.s32.totalorder %s157, %s173
      %p175 = scmp.eq.s32.totalorder %s23, 0
      %p176 = por %p174, %p175
      %s177 = sadd.s32 %s24, %s25
      %s178 = sadd.s32 %s36, %s32
      %s179 = ssub.s32 %s177, %s178
      %p180 = scmp.eq.s32.totalorder %s179, 0
      %s182 = sadd.s32 %s181, 1
      %s183 = scalar_select %p180, %s181, %s182
      %p186 = pneg %p180
      %p187 = scmp.eq.s32.totalorder %s17, 1
      %p188 = por %p186, %p187
      %p189 = scmp.ne.s32.totalorder %s181, %s184
      %p190 = scmp.eq.s32.totalorder %s17, 0
      %p191 = por %p189, %p190
      %p192 = scmp.ne.s32.totalorder %s181, %s184
      %p193 = scmp.eq.s32.totalorder %s22, 1
      %p194 = por %p192, %p193
      %p195 = scmp.ne.s32.totalorder %s184, %s185
      %p196 = scmp.eq.s32.totalorder %s22, 0
      %p197 = por %p195, %p196
      %p198 = scmp.ne.s32.totalorder %s184, %s185
      %p199 = scmp.eq.s32.totalorder %s23, 1
      %p200 = por %p198, %p199
      %p202 = scmp.ne.s32.totalorder %s185, %s201
      %p203 = scmp.eq.s32.totalorder %s23, 0
      %p204 = por %p202, %p203
      %s205 = ssub.s32 %s24, %s36
      %p206 = scmp.eq.s32.totalorder %s205, 0
      %s208 = sadd.s32 %s207, 1
      %s209 = scalar_select %p206, %s207, %s208
      %p212 = pneg %p206
      %p213 = scmp.eq.s32.totalorder %s17, 1
      %p214 = por %p212, %p213
      %p215 = scmp.ne.s32.totalorder %s207, %s210
      %p216 = scmp.eq.s32.totalorder %s17, 0
      %p217 = por %p215, %p216
      %p218 = scmp.ne.s32.totalorder %s207, %s210
      %p219 = scmp.eq.s32.totalorder %s22, 1
      %p220 = por %p218, %p219
      %p221 = scmp.ne.s32.totalorder %s210, %s211
      %p222 = scmp.eq.s32.totalorder %s22, 0
      %p223 = por %p221, %p222
      %p224 = scmp.ne.s32.totalorder %s210, %s211
      %p225 = scmp.eq.s32.totalorder %s23, 1
      %p226 = por %p224, %p225
      %p228 = scmp.ne.s32.totalorder %s211, %s227
      %p229 = scmp.eq.s32.totalorder %s23, 0
      %p230 = por %p228, %p229
      %p231 = scmp.le.s32.totalorder 1, %s17
      %p232 = scmp.lt.s32.totalorder %s17, 3
      %p233 = pnand %p231, %p232
      %p234 = pneg %p233
      // Predicated region
      $region9: #{tpu_custom_call.1} parent=5 // pred_check
        _
      $region10: #{tpu_custom_call.1} parent=5 // pred_check_branch
        %236 = sbr.rel (%p233) target = $region12
      $region11: #{tpu_custom_call.1} parent=5 // pred_region
        %s237 = ssub.s32 %s17, 1
        // Predicated region
        $region13: #{tpu_custom_call.1} parent=11 // pred_check
          %p238 = pneg %p78
        $region14: #{tpu_custom_call.1} parent=11 // pred_check_branch
          %240 = sbr.rel (%p238) target = $region16
        $region15: #{tpu_custom_call.1} parent=11 // pred_region
          %s242 = ssub.s32 256, 256
          %243 = vsyncadd [#allocation5], %s242
          %s244 = sshll.u32 [#allocation4], 4
          %s245 = int_to_ptr.vmem [resolvable:$true] %s244
          %250 = dma.hbm_to_vmem [thread:$0]  %s1, 256, %s245, [#allocation5], 128, 128, 8
        $region16: #{tpu_custom_call.1} parent=11 // pred_fallthru
          _
        // Predicated region
        $region17: #{tpu_custom_call.1} parent=11 // pred_check
          %p251 = pneg %p99
        $region18: #{tpu_custom_call.1} parent=11 // pred_check_branch
          %253 = sbr.rel (%p251) target = $region20
        $region19: #{tpu_custom_call.1} parent=11 // pred_region
          _
        $region20: #{tpu_custom_call.1} parent=11 // pred_fallthru
          _
        // Predicated region
        $region21: #{tpu_custom_call.1} parent=11 // pred_check
          %p254 = pneg %p120
        $region22: #{tpu_custom_call.1} parent=11 // pred_check_branch
          %256 = sbr.rel (%p254) target = $region24
        $region23: #{tpu_custom_call.1} parent=11 // pred_region
          _
        $region24: #{tpu_custom_call.1} parent=11 // pred_fallthru
          _
        // Predicated region
        $region25: #{tpu_custom_call.1} parent=11 // pred_check
          %p257 = pneg %p141
        $region26: #{tpu_custom_call.1} parent=11 // pred_check_branch
          %259 = sbr.rel (%p257) target = $region28
        $region27: #{tpu_custom_call.1} parent=11 // pred_region
          _
        $region28: #{tpu_custom_call.1} parent=11 // pred_fallthru
          _
      $region12: #{tpu_custom_call.1} parent=5 // pred_fallthru
        _
      %p260 = scmp.lt.s32.totalorder %s17, 2
      // Predicated region
      $region29: #{tpu_custom_call.1} parent=5 // pred_check
        %p261 = pneg %p260
      $region30: #{tpu_custom_call.1} parent=5 // pred_check_branch
        %263 = sbr.rel (%p261) target = $region32
      $region31: #{tpu_custom_call.1} parent=5 // pred_region
        // Predicated region
        $region33: #{tpu_custom_call.1} parent=31 // pred_check
          %p264 = pneg %p51
        $region34: #{tpu_custom_call.1} parent=31 // pred_check_branch
          %266 = sbr.rel (%p264) target = $region36
        $region35: #{tpu_custom_call.1} parent=31 // pred_region
          %s267 = sand.u32 %s41, 1
          %s268 = sand.u32 %s41, 1
          %s269 = smul.addr %s268, 8
          %s270 = scalar_lea.vmem [#allocation3], %s269
          %s271 = sadd.s32 %s24, %s25
          %s272 = smul.addr %s271, 4
          %s273 = scalar_lea.vmem %s0, %s272
          // Predicated region
          $region37: #{tpu_custom_call.1} parent=35 // pred_check
            _
          $region38: #{tpu_custom_call.1} parent=35 // pred_check_branch
            %275 = sbr.rel (0) target = $region40
          $region39: #{tpu_custom_call.1} parent=35 // pred_region
            // Predicated region
            $region41: #{tpu_custom_call.1} parent=39 // pred_check
              _
            $region42: #{tpu_custom_call.1} parent=39 // pred_check_branch
              %277 = sbr.rel target = $region44
            $region43: #{tpu_custom_call.1} parent=39 // pred_region
              // Predicated region
              $region56: #{tpu_custom_call.1} parent=43 // pred_check
                _
              $region57: #{tpu_custom_call.1} parent=43 // pred_check_branch
                %294 = sbr.rel (0) target = $region59
              $region58: #{tpu_custom_call.1} parent=43 // pred_region
                loop: start=0, step=1, limit=1
                $region60: #{tpu_custom_call.1} parent=58 // loop_pre_header
                  _
                $region61: #{tpu_custom_call.1} parent=58 // loop_header
                  %s296 = sphi 0, %s300
                  %p297 = scmp.ge.s32.totalorder %s296, 1
                  %s301 = sphi %s273, %s273
                  %s302 = sphi %s270, %s270
                $region62: #{tpu_custom_call.1} parent=58 // loop_header_branch
                  %299 = sbr.rel (%p297) target = $region66
                $region63: #{tpu_custom_call.1} parent=58 // loop_body
                  _
                $region64: #{tpu_custom_call.1} parent=58 // loop_footer
                  %s300 = sadd.s32 1, %s296
                $region65: #{tpu_custom_call.1} parent=58 // loop_footer_branch
                  %295 = sbr.rel target = $region61
                $region66: #{tpu_custom_call.1} parent=58 // loop_exit
                  _
                loop: start=0, step=1, limit=1
                $region67: #{tpu_custom_call.1} parent=58 // loop_pre_header
                  _
                $region68: #{tpu_custom_call.1} parent=58 // loop_header
                  %s305 = sphi 0, %s309
                  %p306 = scmp.ge.s32.totalorder %s305, 1
                  %s310 = sphi %s273, %s273
                  %s311 = sphi %s270, %s270
                $region69: #{tpu_custom_call.1} parent=58 // loop_header_branch
                  %308 = sbr.rel (%p306) target = $region73
                $region70: #{tpu_custom_call.1} parent=58 // loop_body
                  %v312 = vld [vmem:[%s310] sm:$0xf]
                  %313 = vst [vmem:[%s311] sm:$0xf] %v312
                  %v314 = vld [vmem:[%s310 + $0x8] sm:$0xf]
                  %315 = vst [vmem:[%s311 + $0x4] sm:$0xf] %v314
                $region71: #{tpu_custom_call.1} parent=58 // loop_footer
                  %s309 = sadd.s32 1, %s305
                $region72: #{tpu_custom_call.1} parent=58 // loop_footer_branch
                  %304 = sbr.rel target = $region68
                $region73: #{tpu_custom_call.1} parent=58 // loop_exit
                  _
              $region59: #{tpu_custom_call.1} parent=43 // pred_fallthru
                _
            $region44: #{tpu_custom_call.1} parent=39 // pred_fallthru
              _
            // Predicated region
            $region45: #{tpu_custom_call.1} parent=39 // pred_check
              _
            $region46: #{tpu_custom_call.1} parent=39 // pred_check_branch
              %279 = sbr.rel (0) target = $region48
            $region47: #{tpu_custom_call.1} parent=39 // pred_region
              loop: start=0, step=1, limit=1
              $region49: #{tpu_custom_call.1} parent=47 // loop_pre_header
                _
              $region50: #{tpu_custom_call.1} parent=47 // loop_header
                %s282 = sphi 0, %s286
                %p283 = scmp.ge.s32.totalorder %s282, 1
                %s287 = sphi %s273, %s273
                %s288 = sphi %s270, %s270
              $region51: #{tpu_custom_call.1} parent=47 // loop_header_branch
                %285 = sbr.rel (%p283) target = $region55
              $region52: #{tpu_custom_call.1} parent=47 // loop_body
                %v289 = vld [vmem:[%s287] sm:$0xf]
                %290 = vst [vmem:[%s288] sm:$0xf] %v289
                %v291 = vld [vmem:[%s287 + $0x8] sm:$0xf]
                %292 = vst [vmem:[%s288 + $0x4] sm:$0xf] %v291
              $region53: #{tpu_custom_call.1} parent=47 // loop_footer
                %s286 = sadd.s32 1, %s282
              $region54: #{tpu_custom_call.1} parent=47 // loop_footer_branch
                %281 = sbr.rel target = $region50
              $region55: #{tpu_custom_call.1} parent=47 // loop_exit
                _
            $region48: #{tpu_custom_call.1} parent=39 // pred_fallthru
              _
          $region40: #{tpu_custom_call.1} parent=35 // pred_fallthru
            _
          %316 = vnop
        $region36: #{tpu_custom_call.1} parent=31 // pred_fallthru
          _
        // Predicated region
        $region74: #{tpu_custom_call.1} parent=31 // pred_check
          %p317 = pneg %p163
        $region75: #{tpu_custom_call.1} parent=31 // pred_check_branch
          %319 = sbr.rel (%p317) target = $region77
        $region76: #{tpu_custom_call.1} parent=31 // pred_region
          %s320 = sadd.s32 %s24, %s25
          %p321 = scmp.lt.s32.totalorder %s320, 1
          %s322 = scalar_select %p321, %s320, 1
          %s323 = scalar_lea.vmem %s5, %s322
          %s324 = sadd.s32 %s24, %s25
        $region77: #{tpu_custom_call.1} parent=31 // pred_fallthru
          _
        // Predicated region
        $region78: #{tpu_custom_call.1} parent=31 // pred_check
          %p325 = pneg %p191
        $region79: #{tpu_custom_call.1} parent=31 // pred_check_branch
          %327 = sbr.rel (%p325) target = $region81
        $region80: #{tpu_custom_call.1} parent=31 // pred_region
          %s328 = sadd.s32 %s24, %s25
          %p329 = scmp.lt.s32.totalorder %s328, 1
          %s330 = scalar_select %p329, %s328, 1
          %s331 = scalar_lea.vmem %s6, %s330
          %s332 = sadd.s32 %s24, %s25
        $region81: #{tpu_custom_call.1} parent=31 // pred_fallthru
          _
      $region32: #{tpu_custom_call.1} parent=5 // pred_fallthru
        _
      %p333 = scmp.le.s32.totalorder 1, %s17
      %p334 = scmp.lt.s32.totalorder %s17, 3
      %p335 = pnand %p333, %p334
      %p336 = pneg %p335
      // Predicated region
      $region82: #{tpu_custom_call.1} parent=5 // pred_check
        _
      $region83: #{tpu_custom_call.1} parent=5 // pred_check_branch
        %338 = sbr.rel (%p335) target = $region85
      $region84: #{tpu_custom_call.1} parent=5 // pred_region
        %s339 = ssub.s32 %s17, 1
        %s340 = sand.u32 %s44, 1
        %s341 = sand.u32 %s44, 1
        %s342 = smul.addr %s341, 8
        %s343 = scalar_lea.vmem [#allocation3], %s342
        // Predicated region
        $region86: #{tpu_custom_call.1} parent=84 // pred_check
          %p344 = pneg %p57
        $region87: #{tpu_custom_call.1} parent=84 // pred_check_branch
          %346 = sbr.rel (%p344) target = $region89
        $region88: #{tpu_custom_call.1} parent=84 // pred_region
          _
        $region89: #{tpu_custom_call.1} parent=84 // pred_fallthru
          _
        // Predicated region
        $region90: #{tpu_custom_call.1} parent=84 // pred_check
          %p347 = pneg %p78
        $region91: #{tpu_custom_call.1} parent=84 // pred_check_branch
          %349 = sbr.rel (%p347) target = $region93
        $region92: #{tpu_custom_call.1} parent=84 // pred_region
          %350 = dma.done [#allocation5], 256
        $region93: #{tpu_custom_call.1} parent=84 // pred_fallthru
          _
        %s351 = sand.u32 %s44, 1
        %s352 = sand.u32 %s44, 1
        %s353 = smul.addr %s352, 8
        %s354 = scalar_lea.vmem [#allocation3], %s353
        %p355 = pneg %p57
        %p356 = pneg %p54
        %p357 = pneg %p78
        %p358 = pneg %p75
        %p359 = pneg %p99
        %p360 = pneg %p96
        %p361 = pneg %p120
        %p362 = pneg %p117
        %p363 = pneg %p141
        %p364 = pneg %p138
        %s365 = sadd.s32 %s26, %s27
        %p366 = scmp.lt.s32.totalorder %s365, 1
        %s367 = scalar_select %p366, %s365, 1
        %s368 = scalar_lea.vmem %s5, %s367
        %p369 = pneg %p169
        %p370 = pneg %p166
        %s371 = sadd.s32 %s26, %s27
        %p372 = scmp.lt.s32.totalorder %s371, 1
        %s373 = scalar_select %p372, %s371, 1
        %s374 = scalar_lea.vmem %s6, %s373
        %p375 = pneg %p197
        %p376 = pneg %p194
        %p377 = pneg %p223
        %p378 = pneg %p220
        %s379 = sand.u32 %s210, 1
        %s380 = scalar_lea.sflag [#allocation6], %s379
        %s381 = sand.u32 %s210, 1
        %s382 = smul.addr %s381, 8
        %s383 = scalar_lea.vmem [#allocation7], %s382
        %s384 = sadd.s32 %s26, %s27
        %s385 = sadd.s32 %s26, %s27
        %p386 = scmp.lt.s32.totalorder %s385, 1
        %s387 = scalar_select %p386, %s385, 1
        %s388 = scalar_lea.vmem %s5, %s387
        %s389 = sadd.s32 %s26, %s27
        %s390 = sadd.s32 %s26, %s27
        %p391 = scmp.lt.s32.totalorder %s390, 1
        %s392 = scalar_select %p391, %s390, 1
        %s393 = scalar_lea.vmem %s6, %s392
        %s394 = sadd.s32 %s26, %s27
        %p395 = scmp.eq.s32.totalorder %s27, 0
        // Predicated region
        $region94: #{tpu_custom_call.1} parent=84 // pred_check
          %p396 = pneg %p395
        $region95: #{tpu_custom_call.1} parent=84 // pred_check_branch
          %398 = sbr.rel (%p396) target = $region97
        $region96: #{tpu_custom_call.1} parent=84 // pred_region
          %399 = vst [vmem:[#allocation2] sm:$0x1] 0.0
        $region97: #{tpu_custom_call.1} parent=84 // pred_fallthru
          _
        %v400 = vld [vmem:[%s343] sm:$0xf]
        %v401 = vld [vmem:[%s343 + $0x4] sm:$0xf]
        %v402 = vunpack.c.l.bf16 %v400
        %v403 = vunpack.c.l.bf16 %v401
        %v404 = vld [vmem:[#allocation4] sm:$0xff]
        %v405 = vld [vmem:[#allocation4 + $0x8] sm:$0x3]
        %v406 = vld [vmem:[%s2] sm:$0xff]
        %v407 = vld [vmem:[%s2 + $0x8] sm:$0x3]
        %409 = vset.pattern.permute.xlu0 0
        %410 = vperm.xlu0 %409, %v406
        %v411 = vpop.permute.xlu0 %410
        %414 = vset.pattern.permute.xlu0 0
        %415 = vperm.xlu0 %414, %v407
        %v416 = vpop.permute.xlu0 %415
        %vm418 = vcmask 130048
        %v420 = vsel %vm418, %v404, 0
        %v423 = vsel %vm418, %v405, 0
        %425 = vmatprep.subr.mxu0 0.0
        %426 = vmatpush1.msra.mxu0 %v402
        %427 = vmatprep.subr.mxu0 0.0
        %428 = vmatpush1.msra.mxu0 %v403
        %429 = vmatprep.subr.mxu0 0.0
        %430 = vmatpush1.msra.mxu0 0.0
        %431 = vmatprep.subr.mxu0 0.0
        %432 = vmatpush1.msra.mxu0 0.0
        %433 = vmatprep.subr.mxu0 0.0
        %434 = vmatpush1.msra.mxu0 0.0
        %435 = vmatprep.subr.mxu0 0.0
        %436 = vmatpush1.msra.mxu0 0.0
        %437 = vmatprep.subr.mxu0 0.0
        %438 = vmatpush1.msra.mxu0 0.0
        %439 = vmatprep.subr.mxu0 0.0
        %440 = vmatpush1.msra.mxu0 0.0
        %441 = vmatprep.subr.mxu0 0.0
        %442 = vmatpush1.msra.mxu0 0.0
        %443 = vmatprep.subr.mxu0 0.0
        %444 = vmatpush1.msra.mxu0 0.0
        %445 = vmatprep.subr.mxu0 0.0
        %446 = vmatpush1.msra.mxu0 0.0
        %447 = vmatprep.subr.mxu0 0.0
        %448 = vmatpush1.msra.mxu0 0.0
        %449 = vmatprep.subr.mxu0 0.0
        %450 = vmatpush1.msra.mxu0 0.0
        %451 = vmatprep.subr.mxu0 0.0
        %452 = vmatpush1.msra.mxu0 0.0
        %453 = vmatprep.subr.mxu0 0.0
        %454 = vmatpush1.msra.mxu0 0.0
        %455 = vmatprep.subr.mxu0 0.0
        %456 = vmatpush1.msra.mxu0 0.0
        %457 = vmatprep.subr.mxu0 0.0
        %458 = vmatpush1.msra.mxu0 0.0
        %459 = vmatprep.subr.mxu0 0.0
        %460 = vmatpush1.msra.mxu0 0.0
        %461 = vmatprep.subr.mxu0 0.0
        %462 = vmatpush1.msra.mxu0 0.0
        %463 = vmatprep.subr.mxu0 0.0
        %464 = vmatpush1.msra.mxu0 0.0
        %465 = vmatprep.subr.mxu0 0.0
        %466 = vmatpush1.msra.mxu0 0.0
        %467 = vmatprep.subr.mxu0 0.0
        %468 = vmatpush1.msra.mxu0 0.0
        %469 = vmatprep.subr.mxu0 0.0
        %470 = vmatpush1.msra.mxu0 0.0
        %471 = vmatprep.subr.mxu0 0.0
        %472 = vmatpush1.msra.mxu0 0.0
        %473 = vmatprep.subr.mxu0 0.0
        %474 = vmatpush1.msra.mxu0 0.0
        %475 = vmatprep.subr.mxu0 0.0
        %476 = vmatpush1.msra.mxu0 0.0
        %477 = vmatprep.subr.mxu0 0.0
        %478 = vmatpush1.msra.mxu0 0.0
        %479 = vmatprep.subr.mxu0 0.0
        %480 = vmatpush1.msra.mxu0 0.0
        %481 = vmatprep.subr.mxu0 0.0
        %482 = vmatpush1.msra.mxu0 0.0
        %483 = vmatprep.subr.mxu0 0.0
        %484 = vmatpush1.msra.mxu0 0.0
        %485 = vmatprep.subr.mxu0 0.0
        %486 = vmatpush1.msra.mxu0 0.0
        %487 = vmatprep.subr.mxu0 0.0
        %488 = vmatpush1.msra.mxu0 0.0
        %489 = vmatprep.mubr.f32.mxu0 0.0
        %490 = vmatmul.mubr.f32.gmra.mrb[0].mxu0 %v420
        %v491 = vpop.f32.mrb[0].mxu0
        %v492 = vadd.f32 %v411, %v491
        %v493 = vpop.f32.mrb[0].mxu0
        %494 = vmatprep.mubr.f32.mxu0 0.0
        %495 = vmatmul.mubr.f32.gmra.mrb[0].mxu0 %v423
        %v496 = vpop.f32.mrb[0].mxu0
        %v497 = vadd.f32 %v416, %v496
        %v498 = vpop.f32.mrb[0].mxu0
        %499 = vdwg.mxu0
        %v500 = vtanh.pop %v492
        %v501 = vtanh.pop %v497
        %v502 = vld [vmem:[%s3] sm:$0xff]
        %v503 = vld [vmem:[%s4] sm:$0xff]
        %505 = vset.pattern.permute.xlu0 0
        %506 = vperm.xlu0 %505, %v503
        %v507 = vpop.permute.xlu0 %506
        %vm509 = vcmask 80896
        %v511 = vsel %vm509, %v502, 0
        %vm513 = vcmask 1041408
        %v515 = vsel %vm513, %v501, 0
        %517 = vmatprep.subr.mxu0 0.0
        %518 = vmatpush1.msra.mxu0 %v500
        %519 = vmatprep.subr.mxu0 0.0
        %520 = vmatpush1.msra.mxu0 %v515
        %521 = vmatprep.subr.mxu0 0.0
        %522 = vmatpush1.msra.mxu0 0.0
        %523 = vmatprep.subr.mxu0 0.0
        %524 = vmatpush1.msra.mxu0 0.0
        %525 = vmatprep.subr.mxu0 0.0
        %526 = vmatpush1.msra.mxu0 0.0
        %527 = vmatprep.subr.mxu0 0.0
        %528 = vmatpush1.msra.mxu0 0.0
        %529 = vmatprep.subr.mxu0 0.0
        %530 = vmatpush1.msra.mxu0 0.0
        %531 = vmatprep.subr.mxu0 0.0
        %532 = vmatpush1.msra.mxu0 0.0
        %533 = vmatprep.subr.mxu0 0.0
        %534 = vmatpush1.msra.mxu0 0.0
        %535 = vmatprep.subr.mxu0 0.0
        %536 = vmatpush1.msra.mxu0 0.0
        %537 = vmatprep.subr.mxu0 0.0
        %538 = vmatpush1.msra.mxu0 0.0
        %539 = vmatprep.subr.mxu0 0.0
        %540 = vmatpush1.msra.mxu0 0.0
        %541 = vmatprep.subr.mxu0 0.0
        %542 = vmatpush1.msra.mxu0 0.0
        %543 = vmatprep.subr.mxu0 0.0
        %544 = vmatpush1.msra.mxu0 0.0
        %545 = vmatprep.subr.mxu0 0.0
        %546 = vmatpush1.msra.mxu0 0.0
        %547 = vmatprep.subr.mxu0 0.0
        %548 = vmatpush1.msra.mxu0 0.0
        %549 = vmatprep.subr.mxu0 0.0
        %550 = vmatpush1.msra.mxu0 0.0
        %551 = vmatprep.subr.mxu0 0.0
        %552 = vmatpush1.msra.mxu0 0.0
        %553 = vmatprep.subr.mxu0 0.0
        %554 = vmatpush1.msra.mxu0 0.0
        %555 = vmatprep.subr.mxu0 0.0
        %556 = vmatpush1.msra.mxu0 0.0
        %557 = vmatprep.subr.mxu0 0.0
        %558 = vmatpush1.msra.mxu0 0.0
        %559 = vmatprep.subr.mxu0 0.0
        %560 = vmatpush1.msra.mxu0 0.0
        %561 = vmatprep.subr.mxu0 0.0
        %562 = vmatpush1.msra.mxu0 0.0
        %563 = vmatprep.subr.mxu0 0.0
        %564 = vmatpush1.msra.mxu0 0.0
        %565 = vmatprep.subr.mxu0 0.0
        %566 = vmatpush1.msra.mxu0 0.0
        %567 = vmatprep.subr.mxu0 0.0
        %568 = vmatpush1.msra.mxu0 0.0
        %569 = vmatprep.subr.mxu0 0.0
        %570 = vmatpush1.msra.mxu0 0.0
        %571 = vmatprep.subr.mxu0 0.0
        %572 = vmatpush1.msra.mxu0 0.0
        %573 = vmatprep.subr.mxu0 0.0
        %574 = vmatpush1.msra.mxu0 0.0
        %575 = vmatprep.subr.mxu0 0.0
        %576 = vmatpush1.msra.mxu0 0.0
        %577 = vmatprep.subr.mxu0 0.0
        %578 = vmatpush1.msra.mxu0 0.0
        %579 = vmatprep.subr.mxu0 0.0
        %580 = vmatpush1.msra.mxu0 0.0
        %581 = vmatprep.mubr.f32.mxu0 0.0
        %582 = vmatmul.mubr.f32.gmra.mrb[0].mxu0 %v511
        %v583 = vpop.f32.mrb[0].mxu0
        %v584 = vadd.f32 %v507, %v583
        %v585 = vpop.f32.mrb[0].mxu0
        %586 = vdwg.mxu0
        %v587 = vrot.slane %v584, 4
        %v588 = vmax.f32 %v584, %v587
        %v589 = vrot.slane %v588, 2
        %v590 = vmax.f32 %v588, %v589
        %v591 = vrot.slane %v590, 1
        %v592 = vmax.f32 %v590, %v591
        %v593 = vsub.f32 %v584, %v592
        %v594 = vmul.f32 %v593, 1.442695
        %v595 = vpow.pop %v594
        %v596 = vrot.slane %v595, 4
        %v597 = vadd.f32 %v595, %v596
        %v598 = vrot.slane %v597, 2
        %v599 = vadd.f32 %v597, %v598
        %v600 = vrot.slane %v599, 1
        %v601 = vadd.f32 %v599, %v600
        %v602 = vlog2.pop %v601
        %v603 = vmul.f32 %v602, 0.6931472
        %v604 = vadd.f32 %v592, %v603
        %v605 = vlaneseq
        %v606 = vshrl.u32 %v605, 7
        %v607 = vld [vmem:[%s388] sm:$0x1]
        %v608 = vlaneseq
        %v609 = vshrl.u32 %v608, 7
        %v610 = vsub.s32 0, %v609
        %v611 = vrot.slane %v607, %v610
        %vm612 = vcmp.eq.s32.totalorder %v606, %v611
        %v613 = vsel %vm612, 1, 0
        %v614 = vcvt.s32.f32 %v613
        %v615 = vmul.f32 %v584, %v614
        %v616 = vrot.slane %v615, 4
        %v617 = vadd.f32 %v615, %v616
        %v618 = vrot.slane %v617, 2
        %v619 = vadd.f32 %v617, %v618
        %v620 = vrot.slane %v619, 1
        %v621 = vadd.f32 %v619, %v620
        %v622 = vsub.f32 %v604, %v621
        %v623 = vld [vmem:[#allocation2] sm:$0x1]
        %v624 = vld [vmem:[%s393] sm:$0x1]
        %v625 = vmul.f32 %v622, %v624
        %v626 = vadd.f32 %v623, %v625
        %627 = vst [vmem:[#allocation2] sm:$0x1] %v626
        // Predicated region
        $region98: #{tpu_custom_call.1} parent=84 // pred_check
          %p628 = pneg %p395
        $region99: #{tpu_custom_call.1} parent=84 // pred_check_branch
          %630 = sbr.rel (%p628) target = $region101
        $region100: #{tpu_custom_call.1} parent=84 // pred_region
          %v631 = vld [vmem:[#allocation2] sm:$0x1]
          %vm632 = vcmask 1040384
          %v633 = vsel %vm632, %v631, 0.0
          %634 = vadd.xlane.f32.xlu0 %v633
          %v635 = vpop.xlane.xlu0 %634
          %v636 = vrot.slane %v635, 4
          %v637 = vadd.f32 %v635, %v636
          %v638 = vrot.slane %v637, 2
          %v639 = vadd.f32 %v637, %v638
          %v640 = vrot.slane %v639, 1
          %v641 = vadd.f32 %v639, %v640
          %s642 = vtos %v641
          %s643 = smul.f32 %s642, 0.125
          %v644 = vstv %s643
          %645 = vst [vmem:[%s383] sm:$0xff] %v644
        $region101: #{tpu_custom_call.1} parent=84 // pred_fallthru
          _
        %s646 = sand.u32 %s210, 1
        %s647 = scalar_lea.sflag [#allocation6], %s646
        %s648 = sand.u32 %s210, 1
        %s649 = smul.addr %s648, 8
        %s650 = scalar_lea.vmem [#allocation7], %s649
        // Predicated region
        $region102: #{tpu_custom_call.1} parent=84 // pred_check
          %p651 = pneg %p220
        $region103: #{tpu_custom_call.1} parent=84 // pred_check_branch
          %653 = sbr.rel (%p651) target = $region105
        $region104: #{tpu_custom_call.1} parent=84 // pred_region
          %s655 = ssub.s32 128, 128
          %656 = vsyncadd %s647, %s655
          %s657 = smul.addr %s26, 128
          %s658 = scalar_lea.hbm %s7, %s657
          %s660 = sshll.u32 %s650, 4
          %s661 = int_to_ptr.vmem [resolvable:$true] %s660
          %663 = dma.vmem_to_hbm [thread:$0]  %s661, 128, %s658, %s647
        $region105: #{tpu_custom_call.1} parent=84 // pred_fallthru
          _
      $region85: #{tpu_custom_call.1} parent=5 // pred_fallthru
        _
      %p664 = scmp.le.s32.totalorder 2, %s17
      // Predicated region
      $region106: #{tpu_custom_call.1} parent=5 // pred_check
        %p665 = pneg %p664
      $region107: #{tpu_custom_call.1} parent=5 // pred_check_branch
        %667 = sbr.rel (%p665) target = $region109
      $region108: #{tpu_custom_call.1} parent=5 // pred_region
        %s668 = ssub.s32 %s17, 2
        // Predicated region
        $region110: #{tpu_custom_call.1} parent=108 // pred_check
          %p669 = pneg %p226
        $region111: #{tpu_custom_call.1} parent=108 // pred_check_branch
          %671 = sbr.rel (%p669) target = $region113
        $region112: #{tpu_custom_call.1} parent=108 // pred_region
          %s672 = sand.u32 %s211, 1
          %s673 = scalar_lea.sflag [#allocation6], %s672
          %s674 = sand.u32 %s211, 1
          %s675 = smul.addr %s674, 8
          %s676 = scalar_lea.vmem [#allocation7], %s675
          %677 = dma.done %s673, 128
        $region113: #{tpu_custom_call.1} parent=108 // pred_fallthru
          _
      $region109: #{tpu_custom_call.1} parent=5 // pred_fallthru
        _
    $region6: #{tpu_custom_call.1} parent=1 // loop_footer
      %s21 = sadd.s32 1, %s17
    $region7: #{tpu_custom_call.1} parent=1 // loop_footer_branch
      %16 = sbr.rel target = $region3
    $region8: #{tpu_custom_call.1} parent=1 // loop_exit
      _
    %678 = vsyncpa [#allocation5], 1
    %s679 = scalar_lea.sflag [#allocation5], 1
    %680 = vsyncpa %s679, 1
    %681 = vsyncpa [#allocation6], 1
    %s682 = scalar_lea.sflag [#allocation6], 1
    %683 = vsyncpa %s682, 1

</llo_original>
